<compile_context>
chip_gen: v5e
topology: v5e:2x2
jax: 0.10.0
libtpu: 0.0.40
codegen_flags: <defaults>
</compile_context>

<pallas_src>
import functools

import jax
import jax.numpy as jnp
from jax import lax
from jax.experimental import pallas as pl
from jax.experimental.pallas import tpu as pltpu


def _round_up(x, m):
    return (x + m - 1) // m * m


def linear_block_forward(x, weight, bias, gamma, beta, *, eps=1e-5, block_b=None):
    """Fused Linear -> BatchNorm1d(training) -> Tanh for 2-D input x."""
    B, K = x.shape
    K2, N = weight.shape
    assert K == K2, "weight must be [n_in, n_out]"
    assert B >= 2, "unbiased batch variance needs at least 2 rows"

    # ---- lane-dense padding of feature dims to multiples of 128 ----------
    K_pad = _round_up(K, 128)
    N_pad = _round_up(N, 128)
    x_p = jnp.pad(x.astype(jnp.float32), ((0, 0), (0, K_pad - K)))
    w_p = jnp.pad(weight.astype(jnp.float32), ((0, K_pad - K), (0, N_pad - N)))
    b_p = jnp.pad(bias.reshape(1, N).astype(jnp.float32), ((0, 0), (0, N_pad - N)))
    g_p = jnp.pad(gamma.reshape(1, N).astype(jnp.float32), ((0, 0), (0, N_pad - N)))
    bt_p = jnp.pad(beta.reshape(1, N).astype(jnp.float32), ((0, 0), (0, N_pad - N)))

    # ---- batch tile: largest candidate dividing B (stats need exact batch) -
    if block_b is None:
        for cand in (1024, 512, 256, 128, 64, 32, 16, 8):
            if B % cand == 0:
                block_b = cand
                break
        else:
            block_b = B
    TB = block_b
    assert B % TB == 0, "batch tile must divide the batch for exact BN stats"
    NB = B // TB

    inv_B = 1.0 / B
    inv_Bm1 = 1.0 / (B - 1)           # unbiased (torch.var default)
    B_f = float(B)

    def kernel(x_ref, w_ref, b_ref, g_ref, bt_ref, o_ref, sum_ref, sq_ref):
        p = pl.program_id(0)          # 0 = stats pass, 1 = normalize pass
        i = pl.program_id(1)          # batch tile index

        # Linear layer: h = x @ W + b  (MXU, f32 accumulate)
        h = jnp.dot(x_ref[...], w_ref[...], preferred_element_type=jnp.float32)
        h = h + b_ref[...]            # (1, N_pad) broadcasts over rows

        @pl.when(jnp.logical_and(p == 0, i == 0))
        def _init():
            sum_ref[...] = jnp.zeros_like(sum_ref)
            sq_ref[...] = jnp.zeros_like(sq_ref)

        @pl.when(p == 0)
        def _stats():
            sum_ref[...] += jnp.sum(h, axis=0, keepdims=True)
            sq_ref[...] += jnp.sum(h * h, axis=0, keepdims=True)

        @pl.when(p == 1)
        def _normalize():
            mean = sum_ref[...] * inv_B
            var = (sq_ref[...] - B_f * mean * mean) * inv_Bm1
            inv_std = lax.rsqrt(var + eps)
            y = jnp.tanh(g_ref[...] * ((h - mean) * inv_std) + bt_ref[...])
            o_ref[...] = y.astype(o_ref.dtype)

    out = pl.pallas_call(
        kernel,
        out_shape=jax.ShapeDtypeStruct((B, N_pad), jnp.float32),
        grid_spec=pltpu.PrefetchScalarGridSpec(
            num_scalar_prefetch=0,
            grid=(2, NB),
            in_specs=[
                pl.BlockSpec((TB, K_pad), lambda p, i: (i, 0)),       # x tile
                pl.BlockSpec((K_pad, N_pad), lambda p, i: (0, 0)),    # W resident
                pl.BlockSpec((1, N_pad), lambda p, i: (0, 0)),        # b resident
                pl.BlockSpec((1, N_pad), lambda p, i: (0, 0)),        # gamma
                pl.BlockSpec((1, N_pad), lambda p, i: (0, 0)),        # beta
            ],
            # Phase 0 never writes the output; keep its block index pinned to 0
            # so the only HBM writebacks are the correct phase-1 tiles.
            out_specs=pl.BlockSpec((TB, N_pad), lambda p, i: (p * i, 0)),
            scratch_shapes=[
                pltpu.VMEM((1, N_pad), jnp.float32),   # per-feature sum
                pltpu.VMEM((1, N_pad), jnp.float32),   # per-feature sum of squares
            ],
        ),
        compiler_params=pltpu.CompilerParams(
            # Both axes are sequential: phase 1 depends on phase-0 stats.
            dimension_semantics=("arbitrary", "arbitrary"),
            vmem_limit_bytes=32 * 1024 * 1024,
        ),
        cost_estimate=pl.CostEstimate(
            flops=2 * (2 * B * K_pad * N_pad) + 10 * B * N_pad,
            transcendentals=B * N_pad,
            bytes_accessed=4 * (2 * B * K_pad + K_pad * N_pad + B * N_pad + 3 * N_pad),
        ),
    )(x_p, w_p, b_p, g_p, bt_p)

    return out[:, :N]
    # TODO(synk): running_mean / running_var buffer updates are a training-time
    # side effect on the module and are not part of the returned value; they
    # could be emitted as extra outputs (mean/var are already in scratch).


if __name__ == "__main__":
    B, N_IN, N_OUT = 256, 64, 32
    EPS = 1e-5

    key = jax.random.PRNGKey(0)
    kx, kw, kb, kg, kbt = jax.random.split(key, 5)

    x = jax.random.normal(kx, (B, N_IN), dtype=jnp.float32)
    # Parameters follow the module's Linear init (randn / sqrt(n_in)); bias /
    # gamma / beta given small random values to exercise every code path.
    weight = jax.random.normal(kw, (N_IN, N_OUT), dtype=jnp.float32) / jnp.sqrt(N_IN)
    bias = jax.random.normal(kb, (N_OUT,), dtype=jnp.float32) * 0.1
    gamma = 1.0 + 0.1 * jax.random.normal(kg, (N_OUT,), dtype=jnp.float32)
    beta = 0.1 * jax.random.normal(kbt, (N_OUT,), dtype=jnp.float32)

    fwd = jax.jit(functools.partial(linear_block_forward, eps=EPS, block_b=128))
    out = jax.block_until_ready(fwd(x, weight, bias, gamma, beta))

    # Pure-JAX reference of LinearBlock.forward (training-mode BatchNorm,
    # unbiased variance as in torch.var).
    h = x @ weight + bias
    mean = jnp.mean(h, axis=0, keepdims=True)
    var = jnp.var(h, axis=0, ddof=1, keepdims=True)
    ref = jnp.tanh(gamma * (h - mean) / jnp.sqrt(var + EPS) + beta)

    assert out.shape == (B, N_OUT)
    assert jnp.allclose(out, ref, atol=1e-4, rtol=1e-4), float(
        jnp.max(jnp.abs(out - ref))
    )

    print("KERNEL_OK")
</pallas_src>

<mosaic_0001>
module attributes {stable_mosaic.version = 11 : i64} {
  func.func @kernel(%arg0: i32, %arg1: i32, %arg2: memref<128x128xf32, #tpu.memory_space<vmem>>, %arg3: memref<128x128xf32, #tpu.memory_space<vmem>>, %arg4: memref<1x128xf32, #tpu.memory_space<vmem>>, %arg5: memref<1x128xf32, #tpu.memory_space<vmem>>, %arg6: memref<1x128xf32, #tpu.memory_space<vmem>>, %arg7: memref<128x128xf32, #tpu.memory_space<vmem>>, %arg8: memref<1x128xf32, #tpu.memory_space<vmem>>, %arg9: memref<1x128xf32, #tpu.memory_space<vmem>>) attributes {dimension_semantics = [#tpu.dimension_semantics<arbitrary>, #tpu.dimension_semantics<arbitrary>], iteration_bounds = array<i64: 2, 2>, scalar_prefetch = 0 : i64, scratch_operands = 2 : i64, tpu.core_type = #tpu.core_type<tc>, window_params = [{transform_indices = @transform_0, window_bounds = array<i64: 128, 128>}, {pipeline_mode = #tpu.pipeline_mode<synchronous>, transform_indices = @transform_1, window_bounds = array<i64: 128, 128>}, {pipeline_mode = #tpu.pipeline_mode<synchronous>, transform_indices = @transform_2, window_bounds = array<i64: 1, 128>}, {pipeline_mode = #tpu.pipeline_mode<synchronous>, transform_indices = @transform_3, window_bounds = array<i64: 1, 128>}, {pipeline_mode = #tpu.pipeline_mode<synchronous>, transform_indices = @transform_4, window_bounds = array<i64: 1, 128>}, {transform_indices = @transform_5, window_bounds = array<i64: 128, 128>}]} {
    %c0 = arith.constant 0 : index
    %c0_0 = arith.constant 0 : index
    %0 = vector.load %arg2[%c0, %c0_0] : memref<128x128xf32, #tpu.memory_space<vmem>>, vector<128x128xf32>
    %c0_1 = arith.constant 0 : index
    %c0_2 = arith.constant 0 : index
    %1 = vector.load %arg3[%c0_1, %c0_2] : memref<128x128xf32, #tpu.memory_space<vmem>>, vector<128x128xf32>
    %cst = arith.constant dense<0.000000e+00> : vector<128x128xf32>
    %2 = tpu.matmul %0, %1, %cst {dimension_numbers = #tpu.dot_dimension_numbers<[1], [0], [0], [1], [0, 0, 1, 1], [], []>} : vector<128x128xf32>, vector<128x128xf32>, vector<128x128xf32> -> vector<128x128xf32>
    %c0_3 = arith.constant 0 : index
    %c0_4 = arith.constant 0 : index
    %3 = vector.load %arg4[%c0_3, %c0_4] : memref<1x128xf32, #tpu.memory_space<vmem>>, vector<1x128xf32>
    %4 = vector.broadcast %3 : vector<1x128xf32> to vector<128x128xf32>
    %5 = arith.addf %2, %4 : vector<128x128xf32>
    %c0_i32 = arith.constant 0 : i32
    %6 = arith.cmpi eq, %arg0, %c0_i32 : i32
    %c0_i32_5 = arith.constant 0 : i32
    %7 = arith.cmpi eq, %arg1, %c0_i32_5 : i32
    %8 = arith.andi %6, %7 : i1
    %9 = arith.extui %8 : i1 to i32
    %c0_i32_6 = arith.constant 0 : i32
    %10 = arith.cmpi ne, %9, %c0_i32_6 : i32
    scf.if %10 {
      %cst_10 = arith.constant 0.000000e+00 : f32
      %17 = vector.broadcast %cst_10 : f32 to vector<1x128xf32>
      %c0_11 = arith.constant 0 : index
      %c0_12 = arith.constant 0 : index
      %18 = vector.load %arg8[%c0_11, %c0_12] : memref<1x128xf32, #tpu.memory_space<vmem>>, vector<1x128xf32>
      tpu.vector_store %arg8[%c0_11, %c0_12], %17 {strides = array<i32>} : memref<1x128xf32, #tpu.memory_space<vmem>>, vector<1x128xf32>,
      %cst_13 = arith.constant 0.000000e+00 : f32
      %19 = vector.broadcast %cst_13 : f32 to vector<1x128xf32>
      %c0_14 = arith.constant 0 : index
      %c0_15 = arith.constant 0 : index
      %20 = vector.load %arg9[%c0_14, %c0_15] : memref<1x128xf32, #tpu.memory_space<vmem>>, vector<1x128xf32>
      tpu.vector_store %arg9[%c0_14, %c0_15], %19 {strides = array<i32>} : memref<1x128xf32, #tpu.memory_space<vmem>>, vector<1x128xf32>,
    } else {
    }
    %c0_i32_7 = arith.constant 0 : i32
    %11 = arith.cmpi eq, %arg0, %c0_i32_7 : i32
    %12 = arith.extui %11 : i1 to i32
    %c0_i32_8 = arith.constant 0 : i32
    %13 = arith.cmpi ne, %12, %c0_i32_8 : i32
    scf.if %13 {
      %c0_10 = arith.constant 0 : index
      %c0_11 = arith.constant 0 : index
      %17 = vector.load %arg8[%c0_10, %c0_11] : memref<1x128xf32, #tpu.memory_space<vmem>>, vector<1x128xf32>
      %cst_12 = arith.constant dense<0.000000e+00> : vector<128xf32>
      %18 = vector.multi_reduction <add>, %5, %cst_12 [0] : vector<128x128xf32> to vector<128xf32>
      %19 = vector.shape_cast %18 : vector<128xf32> to vector<1x128xf32>
      %20 = arith.addf %17, %19 : vector<1x128xf32>
      %c0_13 = arith.constant 0 : index
      %c0_14 = arith.constant 0 : index
      %21 = vector.load %arg8[%c0_13, %c0_14] : memref<1x128xf32, #tpu.memory_space<vmem>>, vector<1x128xf32>
      tpu.vector_store %arg8[%c0_13, %c0_14], %20 {strides = array<i32>} : memref<1x128xf32, #tpu.memory_space<vmem>>, vector<1x128xf32>,
      %c0_15 = arith.constant 0 : index
      %c0_16 = arith.constant 0 : index
      %22 = vector.load %arg9[%c0_15, %c0_16] : memref<1x128xf32, #tpu.memory_space<vmem>>, vector<1x128xf32>
      %23 = arith.mulf %5, %5 : vector<128x128xf32>
      %cst_17 = arith.constant dense<0.000000e+00> : vector<128xf32>
      %24 = vector.multi_reduction <add>, %23, %cst_17 [0] : vector<128x128xf32> to vector<128xf32>
      %25 = vector.shape_cast %24 : vector<128xf32> to vector<1x128xf32>
      %26 = arith.addf %22, %25 : vector<1x128xf32>
      %c0_18 = arith.constant 0 : index
      %c0_19 = arith.constant 0 : index
      %27 = vector.load %arg9[%c0_18, %c0_19] : memref<1x128xf32, #tpu.memory_space<vmem>>, vector<1x128xf32>
      tpu.vector_store %arg9[%c0_18, %c0_19], %26 {strides = array<i32>} : memref<1x128xf32, #tpu.memory_space<vmem>>, vector<1x128xf32>,
    } else {
    }
    %c1_i32 = arith.constant 1 : i32
    %14 = arith.cmpi eq, %arg0, %c1_i32 : i32
    %15 = arith.extui %14 : i1 to i32
    %c0_i32_9 = arith.constant 0 : i32
    %16 = arith.cmpi ne, %15, %c0_i32_9 : i32
    scf.if %16 {
      %c0_10 = arith.constant 0 : index
      %c0_11 = arith.constant 0 : index
      %17 = vector.load %arg8[%c0_10, %c0_11] : memref<1x128xf32, #tpu.memory_space<vmem>>, vector<1x128xf32>
      %cst_12 = arith.constant 3.906250e-03 : f32
      %18 = vector.broadcast %cst_12 : f32 to vector<1x128xf32>
      %19 = arith.mulf %17, %18 : vector<1x128xf32>
      %c0_13 = arith.constant 0 : index
      %c0_14 = arith.constant 0 : index
      %20 = vector.load %arg9[%c0_13, %c0_14] : memref<1x128xf32, #tpu.memory_space<vmem>>, vector<1x128xf32>
      %cst_15 = arith.constant 2.560000e+02 : f32
      %21 = vector.broadcast %cst_15 : f32 to vector<1x128xf32>
      %22 = arith.mulf %21, %19 : vector<1x128xf32>
      %23 = arith.mulf %22, %19 : vector<1x128xf32>
      %24 = arith.subf %20, %23 : vector<1x128xf32>
      %cst_16 = arith.constant 0.00392156886 : f32
      %25 = vector.broadcast %cst_16 : f32 to vector<1x128xf32>
      %26 = arith.mulf %24, %25 : vector<1x128xf32>
      %cst_17 = arith.constant 9.99999974E-6 : f32
      %27 = vector.broadcast %cst_17 : f32 to vector<1x128xf32>
      %28 = arith.addf %26, %27 : vector<1x128xf32>
      %29 = math.rsqrt %28 : vector<1x128xf32>
      %c0_18 = arith.constant 0 : index
      %c0_19 = arith.constant 0 : index
      %30 = vector.load %arg5[%c0_18, %c0_19] : memref<1x128xf32, #tpu.memory_space<vmem>>, vector<1x128xf32>
      %31 = vector.broadcast %19 : vector<1x128xf32> to vector<128x128xf32>
      %32 = arith.subf %5, %31 : vector<128x128xf32>
      %33 = vector.broadcast %29 : vector<1x128xf32> to vector<128x128xf32>
      %34 = arith.mulf %32, %33 : vector<128x128xf32>
      %35 = vector.broadcast %30 : vector<1x128xf32> to vector<128x128xf32>
      %36 = arith.mulf %35, %34 : vector<128x128xf32>
      %c0_20 = arith.constant 0 : index
      %c0_21 = arith.constant 0 : index
      %37 = vector.load %arg6[%c0_20, %c0_21] : memref<1x128xf32, #tpu.memory_space<vmem>>, vector<1x128xf32>
      %38 = vector.broadcast %37 : vector<1x128xf32> to vector<128x128xf32>
      %39 = arith.addf %36, %38 : vector<128x128xf32>
      %40 = math.tanh %39 : vector<128x128xf32>
      %c0_22 = arith.constant 0 : index
      %c0_23 = arith.constant 0 : index
      %41 = vector.load %arg7[%c0_22, %c0_23] : memref<128x128xf32, #tpu.memory_space<vmem>>, vector<128x128xf32>
      tpu.vector_store %arg7[%c0_22, %c0_23], %40 {strides = array<i32>} : memref<128x128xf32, #tpu.memory_space<vmem>>, vector<128x128xf32>,
    } else {
    }
    return
  }
  func.func @transform_0(%arg0: i32, %arg1: i32) -> (i32, i32) {
    %c0_i32 = arith.constant 0 : i32
    %c0_i32_0 = arith.constant 0 : i32
    return %arg1, %c0_i32 : i32, i32
  }
  func.func @transform_1(%arg0: i32, %arg1: i32) -> (i32, i32) {
    %c0_i32 = arith.constant 0 : i32
    %c0_i32_0 = arith.constant 0 : i32
    %c0_i32_1 = arith.constant 0 : i32
    return %c0_i32, %c0_i32_0 : i32, i32
  }
  func.func @transform_2(%arg0: i32, %arg1: i32) -> (i32, i32) {
    %c0_i32 = arith.constant 0 : i32
    %c0_i32_0 = arith.constant 0 : i32
    %c0_i32_1 = arith.constant 0 : i32
    return %c0_i32, %c0_i32_0 : i32, i32
  }
  func.func @transform_3(%arg0: i32, %arg1: i32) -> (i32, i32) {
    %c0_i32 = arith.constant 0 : i32
    %c0_i32_0 = arith.constant 0 : i32
    %c0_i32_1 = arith.constant 0 : i32
    return %c0_i32, %c0_i32_0 : i32, i32
  }
  func.func @transform_4(%arg0: i32, %arg1: i32) -> (i32, i32) {
    %c0_i32 = arith.constant 0 : i32
    %c0_i32_0 = arith.constant 0 : i32
    %c0_i32_1 = arith.constant 0 : i32
    return %c0_i32, %c0_i32_0 : i32, i32
  }
  func.func @transform_5(%arg0: i32, %arg1: i32) -> (i32, i32) {
    %0 = arith.muli %arg0, %arg1 : i32
    %c0_i32 = arith.constant 0 : i32
    %c0_i32_0 = arith.constant 0 : i32
    return %0, %c0_i32 : i32, i32
  }
}

</mosaic_0001>

<llo_original>
// kernel: linear_block_forward.1
$region0: #{linear_block_forward.1}
  #allocation0 [shape = 'u32[]', space=smem, size = 0x4, offset = 0x4, fixed_abs, tag = 'smem constant byte address 0x4 - core index']
  #allocation1 [shape = 'u32[72,128]{1,0:T(1,128)}', space=vmem, size = 0x9000, scoped, tag = 'internal scratch']
  #allocation2 [shape = 'f32[1,128]{1,0:T(1,128)}', space=vmem, size = 0x200, scoped, tag = 'scratch operand']
  #allocation3 [shape = 'f32[1,128]{1,0:T(1,128)}', space=vmem, size = 0x200, scoped, tag = 'scratch operand']
  %s0 = inlined_call_operand.vmem [shape: f32[256,128], index: 0, kind: input, shape index: {}]
  %s1 = inlined_call_operand.vmem [shape: f32[128,128], index: 1, kind: input, shape index: {}]
  %s2 = inlined_call_operand.vmem [shape: f32[1,128], index: 2, kind: input, shape index: {}]
  %s3 = inlined_call_operand.vmem [shape: f32[1,128], index: 3, kind: input, shape index: {}]
  %s4 = inlined_call_operand.vmem [shape: f32[1,128], index: 4, kind: input, shape index: {}]
  %s5 = inlined_call_operand.vmem [shape: f32[256,128], index: 5, kind: output, shape index: {}]
  %s6 = sld [smem:[#allocation0]]
  $region65: #{linear_block_forward.1} parent=0
    _
  %s8 = ssub.s32 1, %s6
  %s9 = scalar_select 0, %s8, %s6
  loop: start=0, step=1, limit=6
  $region2: #{linear_block_forward.1} parent=0 // loop_pre_header
    _
  $region3: #{linear_block_forward.1} parent=0 // loop_header
    %s11 = sphi 0, %s15
    %p12 = scmp.ge.s32.totalorder %s11, 6
    %s18 = sphi 0, %s30
    %s19 = sphi 0, %s26
    %s20 = sphi 0, %s18
    %s21 = sphi 0, %s19
    %s22 = sphi 0, %s20
    %s23 = sphi 0, %s21
    %s33 = sphi 0, %s35
    %s36 = sphi 0, %s33
    %s37 = sphi 0, %s36
    %s53 = sphi 0, %s37
    %s57 = sphi 0, %s57
    %s59 = sphi 0, %s57
    %s60 = sphi 0, %s59
    %s74 = sphi 0, %s60
    %s78 = sphi 0, %s78
    %s80 = sphi 0, %s78
    %s81 = sphi 0, %s80
    %s95 = sphi 0, %s81
    %s99 = sphi 0, %s99
    %s101 = sphi 0, %s99
    %s102 = sphi 0, %s101
    %s116 = sphi 0, %s102
    %s120 = sphi 0, %s120
    %s122 = sphi 0, %s120
    %s123 = sphi 0, %s122
    %s137 = sphi 0, %s123
    %s145 = sphi 0, %s147
    %s148 = sphi 0, %s145
    %s149 = sphi 0, %s148
    %s165 = sphi 0, %s149
  $region4: #{linear_block_forward.1} parent=0 // loop_header_branch
    %14 = sbr.rel (%p12) target = $region8
  $region5: #{linear_block_forward.1} parent=0 // loop_body
    %s16 = ssub.s32 %s11, 1
    %s17 = ssub.s32 %s11, 2
    %s24 = sadd.s32 1, %s19
    %p25 = scmp.ge.s32.totalorder %s24, 2
    %s26 = scalar_select %p25, 0, %s24
    %s27 = sadd.s32 1, %s18
    %s28 = scalar_select %p25, %s27, %s18
    %p29 = scmp.ge.s32.totalorder %s28, 2
    %s30 = scalar_select %p29, 0, %s28
    %s31 = ssub.s32 %s19, %s26
    %p32 = scmp.eq.s32.totalorder %s31, 0
    %s34 = sadd.s32 %s33, 1
    %s35 = scalar_select %p32, %s33, %s34
    %p38 = pneg %p32
    %p39 = scmp.eq.s32.totalorder %s11, 3
    %p40 = por %p38, %p39
    %p41 = scmp.ne.s32.totalorder %s33, %s36
    %p42 = scmp.eq.s32.totalorder %s11, 0
    %p43 = por %p41, %p42
    %p44 = scmp.ne.s32.totalorder %s33, %s36
    %p45 = scmp.eq.s32.totalorder %s16, 3
    %p46 = por %p44, %p45
    %p47 = scmp.ne.s32.totalorder %s36, %s37
    %p48 = scmp.eq.s32.totalorder %s16, 0
    %p49 = por %p47, %p48
    %p50 = scmp.ne.s32.totalorder %s36, %s37
    %p51 = scmp.eq.s32.totalorder %s17, 3
    %p52 = por %p50, %p51
    %p54 = scmp.ne.s32.totalorder %s37, %s53
    %p55 = scmp.eq.s32.totalorder %s17, 0
    %p56 = por %p54, %p55
    %s58 = sadd.s32 %s57, 1
    %p61 = scmp.eq.s32.totalorder %s11, 3
    %p62 = scmp.ne.s32.totalorder %s57, %s59
    %p63 = scmp.eq.s32.totalorder %s11, 0
    %p64 = por %p62, %p63
    %p65 = scmp.ne.s32.totalorder %s57, %s59
    %p66 = scmp.eq.s32.totalorder %s16, 3
    %p67 = por %p65, %p66
    %p68 = scmp.ne.s32.totalorder %s59, %s60
    %p69 = scmp.eq.s32.totalorder %s16, 0
    %p70 = por %p68, %p69
    %p71 = scmp.ne.s32.totalorder %s59, %s60
    %p72 = scmp.eq.s32.totalorder %s17, 3
    %p73 = por %p71, %p72
    %p75 = scmp.ne.s32.totalorder %s60, %s74
    %p76 = scmp.eq.s32.totalorder %s17, 0
    %p77 = por %p75, %p76
    %s79 = sadd.s32 %s78, 1
    %p82 = scmp.eq.s32.totalorder %s11, 3
    %p83 = scmp.ne.s32.totalorder %s78, %s80
    %p84 = scmp.eq.s32.totalorder %s11, 0
    %p85 = por %p83, %p84
    %p86 = scmp.ne.s32.totalorder %s78, %s80
    %p87 = scmp.eq.s32.totalorder %s16, 3
    %p88 = por %p86, %p87
    %p89 = scmp.ne.s32.totalorder %s80, %s81
    %p90 = scmp.eq.s32.totalorder %s16, 0
    %p91 = por %p89, %p90
    %p92 = scmp.ne.s32.totalorder %s80, %s81
    %p93 = scmp.eq.s32.totalorder %s17, 3
    %p94 = por %p92, %p93
    %p96 = scmp.ne.s32.totalorder %s81, %s95
    %p97 = scmp.eq.s32.totalorder %s17, 0
    %p98 = por %p96, %p97
    %s100 = sadd.s32 %s99, 1
    %p103 = scmp.eq.s32.totalorder %s11, 3
    %p104 = scmp.ne.s32.totalorder %s99, %s101
    %p105 = scmp.eq.s32.totalorder %s11, 0
    %p106 = por %p104, %p105
    %p107 = scmp.ne.s32.totalorder %s99, %s101
    %p108 = scmp.eq.s32.totalorder %s16, 3
    %p109 = por %p107, %p108
    %p110 = scmp.ne.s32.totalorder %s101, %s102
    %p111 = scmp.eq.s32.totalorder %s16, 0
    %p112 = por %p110, %p111
    %p113 = scmp.ne.s32.totalorder %s101, %s102
    %p114 = scmp.eq.s32.totalorder %s17, 3
    %p115 = por %p113, %p114
    %p117 = scmp.ne.s32.totalorder %s102, %s116
    %p118 = scmp.eq.s32.totalorder %s17, 0
    %p119 = por %p117, %p118
    %s121 = sadd.s32 %s120, 1
    %p124 = scmp.eq.s32.totalorder %s11, 3
    %p125 = scmp.ne.s32.totalorder %s120, %s122
    %p126 = scmp.eq.s32.totalorder %s11, 0
    %p127 = por %p125, %p126
    %p128 = scmp.ne.s32.totalorder %s120, %s122
    %p129 = scmp.eq.s32.totalorder %s16, 3
    %p130 = por %p128, %p129
    %p131 = scmp.ne.s32.totalorder %s122, %s123
    %p132 = scmp.eq.s32.totalorder %s16, 0
    %p133 = por %p131, %p132
    %p134 = scmp.ne.s32.totalorder %s122, %s123
    %p135 = scmp.eq.s32.totalorder %s17, 3
    %p136 = por %p134, %p135
    %p138 = scmp.ne.s32.totalorder %s123, %s137
    %p139 = scmp.eq.s32.totalorder %s17, 0
    %p140 = por %p138, %p139
    %s141 = smul.u32 %s18, %s19
    %s142 = smul.u32 %s30, %s26
    %s143 = ssub.s32 %s141, %s142
    %p144 = scmp.eq.s32.totalorder %s143, 0
    %s146 = sadd.s32 %s145, 1
    %s147 = scalar_select %p144, %s145, %s146
    %p150 = pneg %p144
    %p151 = scmp.eq.s32.totalorder %s11, 3
    %p152 = por %p150, %p151
    %p153 = scmp.ne.s32.totalorder %s145, %s148
    %p154 = scmp.eq.s32.totalorder %s11, 0
    %p155 = por %p153, %p154
    %p156 = scmp.ne.s32.totalorder %s145, %s148
    %p157 = scmp.eq.s32.totalorder %s16, 3
    %p158 = por %p156, %p157
    %p159 = scmp.ne.s32.totalorder %s148, %s149
    %p160 = scmp.eq.s32.totalorder %s16, 0
    %p161 = por %p159, %p160
    %p162 = scmp.ne.s32.totalorder %s148, %s149
    %p163 = scmp.eq.s32.totalorder %s17, 3
    %p164 = por %p162, %p163
    %p166 = scmp.ne.s32.totalorder %s149, %s165
    %p167 = scmp.eq.s32.totalorder %s17, 0
    %p168 = por %p166, %p167
    %p169 = scmp.le.s32.totalorder 1, %s11
    %p170 = scmp.lt.s32.totalorder %s11, 5
    %p171 = pnand %p169, %p170
    %p172 = pneg %p171
    // Predicated region
    $region9: #{linear_block_forward.1} parent=5 // pred_check
      _
    $region10: #{linear_block_forward.1} parent=5 // pred_check_branch
      %174 = sbr.rel (%p171) target = $region12
    $region11: #{linear_block_forward.1} parent=5 // pred_region
      %s175 = ssub.s32 %s11, 1
      // Predicated region
      $region13: #{linear_block_forward.1} parent=11 // pred_check
        %p176 = pneg %p70
      $region14: #{linear_block_forward.1} parent=11 // pred_check_branch
        %178 = sbr.rel (%p176) target = $region16
      $region15: #{linear_block_forward.1} parent=11 // pred_region
        _
      $region16: #{linear_block_forward.1} parent=11 // pred_fallthru
        _
      // Predicated region
      $region17: #{linear_block_forward.1} parent=11 // pred_check
        %p179 = pneg %p91
      $region18: #{linear_block_forward.1} parent=11 // pred_check_branch
        %181 = sbr.rel (%p179) target = $region20
      $region19: #{linear_block_forward.1} parent=11 // pred_region
        _
      $region20: #{linear_block_forward.1} parent=11 // pred_fallthru
        _
      // Predicated region
      $region21: #{linear_block_forward.1} parent=11 // pred_check
        %p182 = pneg %p112
      $region22: #{linear_block_forward.1} parent=11 // pred_check_branch
        %184 = sbr.rel (%p182) target = $region24
      $region23: #{linear_block_forward.1} parent=11 // pred_region
        _
      $region24: #{linear_block_forward.1} parent=11 // pred_fallthru
        _
      // Predicated region
      $region25: #{linear_block_forward.1} parent=11 // pred_check
        %p185 = pneg %p133
      $region26: #{linear_block_forward.1} parent=11 // pred_check_branch
        %187 = sbr.rel (%p185) target = $region28
      $region27: #{linear_block_forward.1} parent=11 // pred_region
        _
      $region28: #{linear_block_forward.1} parent=11 // pred_fallthru
        _
    $region12: #{linear_block_forward.1} parent=5 // pred_fallthru
      _
    %p188 = scmp.lt.s32.totalorder %s11, 4
    // Predicated region
    $region29: #{linear_block_forward.1} parent=5 // pred_check
      %p189 = pneg %p188
    $region30: #{linear_block_forward.1} parent=5 // pred_check_branch
      %191 = sbr.rel (%p189) target = $region32
    $region31: #{linear_block_forward.1} parent=5 // pred_region
      // Predicated region
      $region33: #{linear_block_forward.1} parent=31 // pred_check
        %p192 = pneg %p43
      $region34: #{linear_block_forward.1} parent=31 // pred_check_branch
        %194 = sbr.rel (%p192) target = $region36
      $region35: #{linear_block_forward.1} parent=31 // pred_region
        %s195 = smul.u32 16, %s19
        %p196 = scmp.lt.s32.totalorder %s195, 31
        %s197 = scalar_select %p196, %s195, 31
        %s198 = smul.addr %s197, 8
        %s199 = scalar_lea.vmem %s0, %s198
        %s200 = smul.u32 16, %s19
      $region36: #{linear_block_forward.1} parent=31 // pred_fallthru
        _
    $region32: #{linear_block_forward.1} parent=5 // pred_fallthru
      _
    %p201 = scmp.le.s32.totalorder 1, %s11
    %p202 = scmp.lt.s32.totalorder %s11, 5
    %p203 = pnand %p201, %p202
    %p204 = pneg %p203
    // Predicated region
    $region37: #{linear_block_forward.1} parent=5 // pred_check
      _
    $region38: #{linear_block_forward.1} parent=5 // pred_check_branch
      %206 = sbr.rel (%p203) target = $region40
    $region39: #{linear_block_forward.1} parent=5 // pred_region
      %s207 = ssub.s32 %s11, 1
      %s208 = smul.u32 16, %s21
      %p209 = scmp.lt.s32.totalorder %s208, 31
      %s210 = scalar_select %p209, %s208, 31
      %s211 = smul.addr %s210, 8
      %s212 = scalar_lea.vmem %s0, %s211
      %p213 = pneg %p49
      %p214 = pneg %p46
      %p215 = pneg %p70
      %p216 = pneg %p67
      %p217 = pneg %p91
      %p218 = pneg %p88
      %p219 = pneg %p112
      %p220 = pneg %p109
      %p221 = pneg %p133
      %p222 = pneg %p130
      %p223 = pneg %p161
      %p224 = pneg %p158
      %s225 = smul.u32 %s20, %s21
      %s226 = smul.u32 16, %s225
      %p227 = scmp.lt.s32.totalorder %s226, 31
      %s228 = scalar_select %p227, %s226, 31
      %s229 = smul.addr %s228, 8
      %s230 = scalar_lea.vmem %s5, %s229
      %s231 = smul.u32 16, %s21
      %p232 = scmp.lt.s32.totalorder %s231, 31
      %s233 = scalar_select %p232, %s231, 31
      %s234 = smul.addr %s233, 8
      %s235 = scalar_lea.vmem %s0, %s234
      %s236 = smul.u32 16, %s21
      %s237 = smul.u32 %s20, %s21
      %s238 = smul.u32 16, %s237
      %p239 = scmp.lt.s32.totalorder %s238, 31
      %s240 = scalar_select %p239, %s238, 31
      %s241 = smul.addr %s240, 8
      %s242 = scalar_lea.vmem %s5, %s241
      %s243 = smul.u32 %s20, %s21
      %s244 = smul.u32 16, %s243
      %v245 = vld [vmem:[%s235] sm:$0xff]
      %v246 = vld [vmem:[%s235 + $0x8] sm:$0xff]
      %v247 = vld [vmem:[%s235 + $0x10] sm:$0xff]
      %v248 = vld [vmem:[%s235 + $0x18] sm:$0xff]
      %v249 = vld [vmem:[%s235 + $0x20] sm:$0xff]
      %v250 = vld [vmem:[%s235 + $0x28] sm:$0xff]
      %v251 = vld [vmem:[%s235 + $0x30] sm:$0xff]
      %v252 = vld [vmem:[%s235 + $0x38] sm:$0xff]
      %v253 = vld [vmem:[%s235 + $0x40] sm:$0xff]
      %v254 = vld [vmem:[%s235 + $0x48] sm:$0xff]
      %v255 = vld [vmem:[%s235 + $0x50] sm:$0xff]
      %v256 = vld [vmem:[%s235 + $0x58] sm:$0xff]
      %v257 = vld [vmem:[%s235 + $0x60] sm:$0xff]
      %v258 = vld [vmem:[%s235 + $0x68] sm:$0xff]
      %v259 = vld [vmem:[%s235 + $0x70] sm:$0xff]
      %v260 = vld [vmem:[%s235 + $0x78] sm:$0xff]
      %v261 = vld [vmem:[%s1] sm:$0xff]
      %v262 = vld [vmem:[%s1 + $0x8] sm:$0xff]
      %v263 = vld [vmem:[%s1 + $0x10] sm:$0xff]
      %v264 = vld [vmem:[%s1 + $0x18] sm:$0xff]
      %v265 = vld [vmem:[%s1 + $0x20] sm:$0xff]
      %v266 = vld [vmem:[%s1 + $0x28] sm:$0xff]
      %v267 = vld [vmem:[%s1 + $0x30] sm:$0xff]
      %v268 = vld [vmem:[%s1 + $0x38] sm:$0xff]
      %v269 = vld [vmem:[%s1 + $0x40] sm:$0xff]
      %v270 = vld [vmem:[%s1 + $0x48] sm:$0xff]
      %v271 = vld [vmem:[%s1 + $0x50] sm:$0xff]
      %v272 = vld [vmem:[%s1 + $0x58] sm:$0xff]
      %v273 = vld [vmem:[%s1 + $0x60] sm:$0xff]
      %v274 = vld [vmem:[%s1 + $0x68] sm:$0xff]
      %v275 = vld [vmem:[%s1 + $0x70] sm:$0xff]
      %v276 = vld [vmem:[%s1 + $0x78] sm:$0xff]
      %v277 = vld [vmem:[%s2] sm:$0x1]
      %v279 = vperm.slane %v277, 0
      %281 = vmatpush.msra.mxu0 %v276
      %282 = vmatpush.msra.mxu0 %v275
      %283 = vmatpush.msra.mxu0 %v274
      %284 = vmatpush.msra.mxu0 %v273
      %285 = vmatpush.msra.mxu0 %v272
      %286 = vmatpush.msra.mxu0 %v271
      %287 = vmatpush.msra.mxu0 %v270
      %288 = vmatpush.msra.mxu0 %v269
      %289 = vmatpush.msra.mxu0 %v268
      %290 = vmatpush.msra.mxu0 %v267
      %291 = vmatpush.msra.mxu0 %v266
      %292 = vmatpush.msra.mxu0 %v265
      %293 = vmatpush.msra.mxu0 %v264
      %294 = vmatpush.msra.mxu0 %v263
      %295 = vmatpush.msra.mxu0 %v262
      %296 = vmatpush.msra.mxu0 %v261
      %297 = vmatmul.f32.gmra.mxu0 %v245
      %v298 = vpop.f32.mrf.mxu0
      %v299 = vadd.f32 %v279, %v298
      %300 = vmatmul.f32.gmra.mxu0 %v246
      %v301 = vpop.f32.mrf.mxu0
      %v302 = vadd.f32 %v279, %v301
      %303 = vmatmul.f32.gmra.mxu0 %v247
      %v304 = vpop.f32.mrf.mxu0
      %v305 = vadd.f32 %v279, %v304
      %306 = vmatmul.f32.gmra.mxu0 %v248
      %v307 = vpop.f32.mrf.mxu0
      %v308 = vadd.f32 %v279, %v307
      %309 = vmatmul.f32.gmra.mxu0 %v249
      %v310 = vpop.f32.mrf.mxu0
      %v311 = vadd.f32 %v279, %v310
      %312 = vmatmul.f32.gmra.mxu0 %v250
      %v313 = vpop.f32.mrf.mxu0
      %v314 = vadd.f32 %v279, %v313
      %315 = vmatmul.f32.gmra.mxu0 %v251
      %v316 = vpop.f32.mrf.mxu0
      %v317 = vadd.f32 %v279, %v316
      %318 = vmatmul.f32.gmra.mxu0 %v252
      %v319 = vpop.f32.mrf.mxu0
      %v320 = vadd.f32 %v279, %v319
      %321 = vmatmul.f32.gmra.mxu0 %v253
      %v322 = vpop.f32.mrf.mxu0
      %v323 = vadd.f32 %v279, %v322
      %324 = vmatmul.f32.gmra.mxu0 %v254
      %v325 = vpop.f32.mrf.mxu0
      %v326 = vadd.f32 %v279, %v325
      %327 = vmatmul.f32.gmra.mxu0 %v255
      %v328 = vpop.f32.mrf.mxu0
      %v329 = vadd.f32 %v279, %v328
      %330 = vmatmul.f32.gmra.mxu0 %v256
      %v331 = vpop.f32.mrf.mxu0
      %v332 = vadd.f32 %v279, %v331
      %333 = vmatmul.f32.gmra.mxu0 %v257
      %v334 = vpop.f32.mrf.mxu0
      %v335 = vadd.f32 %v279, %v334
      %336 = vmatmul.f32.gmra.mxu0 %v258
      %v337 = vpop.f32.mrf.mxu0
      %v338 = vadd.f32 %v279, %v337
      %339 = vmatmul.f32.gmra.mxu0 %v259
      %v340 = vpop.f32.mrf.mxu0
      %v341 = vadd.f32 %v279, %v340
      %342 = vmatmul.f32.gmra.mxu0 %v260
      %v343 = vpop.f32.mrf.mxu0
      %v344 = vadd.f32 %v279, %v343
      %345 = vdwg.mxu0
      %p346 = scmp.eq.s32.totalorder %s20, 0
      %p347 = scmp.eq.s32.totalorder %s21, 0
      %p348 = pnand %p346, %p347
      %p349 = pneg %p348
      // Predicated region
      $region41: #{linear_block_forward.1} parent=39 // pred_check
        _
      $region42: #{linear_block_forward.1} parent=39 // pred_check_branch
        %351 = sbr.rel (%p348) target = $region44
      $region43: #{linear_block_forward.1} parent=39 // pred_region
        %352 = vst [vmem:[#allocation2] sm:$0x1] 0.0
        %353 = vst [vmem:[#allocation3] sm:$0x1] 0.0
      $region44: #{linear_block_forward.1} parent=39 // pred_fallthru
        _
      // Predicated region
      $region45: #{linear_block_forward.1} parent=39 // pred_check
        %p354 = pneg %p346
      $region46: #{linear_block_forward.1} parent=39 // pred_check_branch
        %356 = sbr.rel (%p354) target = $region48
      $region47: #{linear_block_forward.1} parent=39 // pred_region
        %v357 = vld [vmem:[#allocation2] sm:$0x1]
        %v358 = vadd.f32 %v299, %v302
        %v359 = vadd.f32 %v358, %v305
        %v360 = vadd.f32 %v359, %v308
        %v361 = vadd.f32 %v360, %v311
        %v362 = vadd.f32 %v361, %v314
        %v363 = vadd.f32 %v362, %v317
        %v364 = vadd.f32 %v363, %v320
        %v365 = vadd.f32 %v364, %v323
        %v366 = vadd.f32 %v365, %v326
        %v367 = vadd.f32 %v366, %v329
        %v368 = vadd.f32 %v367, %v332
        %v369 = vadd.f32 %v368, %v335
        %v370 = vadd.f32 %v369, %v338
        %v371 = vadd.f32 %v370, %v341
        %v372 = vadd.f32 %v371, %v344
        %v373 = vrot.slane %v372, 4
        %v374 = vadd.f32 %v372, %v373
        %v375 = vrot.slane %v374, 2
        %v376 = vadd.f32 %v374, %v375
        %v377 = vrot.slane %v376, 1
        %v378 = vadd.f32 %v376, %v377
        %v379 = vadd.f32 %v357, %v378
        %380 = vst [vmem:[#allocation2] sm:$0x1] %v379
        %v381 = vld [vmem:[#allocation3] sm:$0x1]
        %v382 = vmul.f32 %v299, %v299
        %v383 = vmul.f32 %v302, %v302
        %v384 = vmul.f32 %v305, %v305
        %v385 = vmul.f32 %v308, %v308
        %v386 = vmul.f32 %v311, %v311
        %v387 = vmul.f32 %v314, %v314
        %v388 = vmul.f32 %v317, %v317
        %v389 = vmul.f32 %v320, %v320
        %v390 = vmul.f32 %v323, %v323
        %v391 = vmul.f32 %v326, %v326
        %v392 = vmul.f32 %v329, %v329
        %v393 = vmul.f32 %v332, %v332
        %v394 = vmul.f32 %v335, %v335
        %v395 = vmul.f32 %v338, %v338
        %v396 = vmul.f32 %v341, %v341
        %v397 = vmul.f32 %v344, %v344
        %v398 = vadd.f32 %v382, %v383
        %v399 = vadd.f32 %v398, %v384
        %v400 = vadd.f32 %v399, %v385
        %v401 = vadd.f32 %v400, %v386
        %v402 = vadd.f32 %v401, %v387
        %v403 = vadd.f32 %v402, %v388
        %v404 = vadd.f32 %v403, %v389
        %v405 = vadd.f32 %v404, %v390
        %v406 = vadd.f32 %v405, %v391
        %v407 = vadd.f32 %v406, %v392
        %v408 = vadd.f32 %v407, %v393
        %v409 = vadd.f32 %v408, %v394
        %v410 = vadd.f32 %v409, %v395
        %v411 = vadd.f32 %v410, %v396
        %v412 = vadd.f32 %v411, %v397
        %v413 = vrot.slane %v412, 4
        %v414 = vadd.f32 %v412, %v413
        %v415 = vrot.slane %v414, 2
        %v416 = vadd.f32 %v414, %v415
        %v417 = vrot.slane %v416, 1
        %v418 = vadd.f32 %v416, %v417
        %v419 = vadd.f32 %v381, %v418
        %420 = vst [vmem:[#allocation3] sm:$0x1] %v419
      $region48: #{linear_block_forward.1} parent=39 // pred_fallthru
        _
      %p421 = scmp.eq.s32.totalorder %s20, 1
      // Predicated region
      $region49: #{linear_block_forward.1} parent=39 // pred_check
        %p422 = pneg %p421
      $region50: #{linear_block_forward.1} parent=39 // pred_check_branch
        %424 = sbr.rel (%p422) target = $region52
      $region51: #{linear_block_forward.1} parent=39 // pred_region
        %v425 = vld [vmem:[#allocation2] sm:$0x1]
        %v426 = vmul.f32 %v425, 0.00390625
        %v427 = vld [vmem:[#allocation3] sm:$0x1]
        %v428 = vmul.f32 %v426, 256.0
        %v429 = vmul.f32 %v428, %v426
        %v430 = vsub.f32 %v427, %v429
        %v431 = vmul.f32 %v430, 0.003921569
        %v432 = vadd.f32 %v431, 1e-05
        %v433 = vrsqrt.pop %v432
        %v434 = vmul.f32 %v433, %v432
        %v435 = vmul.f32 %v434, %v433
        %v436 = vmul.f32 0.5, %v435
        %v437 = vsub.f32 1.5, %v436
        %v438 = vmul.f32 %v433, %v437
        %vm439 = vweird.f32 %v432
        %vm440 = vweird.f32 %v433
        %vm441 = vmor %vm439, %vm440
        %v442 = vsel %vm441, %v433, %v438
        %v443 = vld [vmem:[%s3] sm:$0x1]
        %v445 = vperm.slane %v426, 0
        %v447 = vsub.f32 %v299, %v445
        %v448 = vsub.f32 %v302, %v445
        %v449 = vsub.f32 %v305, %v445
        %v450 = vsub.f32 %v308, %v445
        %v451 = vsub.f32 %v311, %v445
        %v452 = vsub.f32 %v314, %v445
        %v453 = vsub.f32 %v317, %v445
        %v454 = vsub.f32 %v320, %v445
        %v455 = vsub.f32 %v323, %v445
        %v456 = vsub.f32 %v326, %v445
        %v457 = vsub.f32 %v329, %v445
        %v458 = vsub.f32 %v332, %v445
        %v459 = vsub.f32 %v335, %v445
        %v460 = vsub.f32 %v338, %v445
        %v461 = vsub.f32 %v341, %v445
        %v462 = vsub.f32 %v344, %v445
        %v464 = vperm.slane %v442, 0
        %v466 = vmul.f32 %v447, %v464
        %v467 = vmul.f32 %v448, %v464
        %v468 = vmul.f32 %v449, %v464
        %v469 = vmul.f32 %v450, %v464
        %v470 = vmul.f32 %v451, %v464
        %v471 = vmul.f32 %v452, %v464
        %v472 = vmul.f32 %v453, %v464
        %v473 = vmul.f32 %v454, %v464
        %v474 = vmul.f32 %v455, %v464
        %v475 = vmul.f32 %v456, %v464
        %v476 = vmul.f32 %v457, %v464
        %v477 = vmul.f32 %v458, %v464
        %v478 = vmul.f32 %v459, %v464
        %v479 = vmul.f32 %v460, %v464
        %v480 = vmul.f32 %v461, %v464
        %v481 = vmul.f32 %v462, %v464
        %v483 = vperm.slane %v443, 0
        %v485 = vmul.f32 %v483, %v466
        %v486 = vmul.f32 %v483, %v467
        %v487 = vmul.f32 %v483, %v468
        %v488 = vmul.f32 %v483, %v469
        %v489 = vmul.f32 %v483, %v470
        %v490 = vmul.f32 %v483, %v471
        %v491 = vmul.f32 %v483, %v472
        %v492 = vmul.f32 %v483, %v473
        %v493 = vmul.f32 %v483, %v474
        %v494 = vmul.f32 %v483, %v475
        %v495 = vmul.f32 %v483, %v476
        %v496 = vmul.f32 %v483, %v477
        %v497 = vmul.f32 %v483, %v478
        %v498 = vmul.f32 %v483, %v479
        %v499 = vmul.f32 %v483, %v480
        %v500 = vmul.f32 %v483, %v481
        %v501 = vld [vmem:[%s4] sm:$0x1]
        %v503 = vperm.slane %v501, 0
        %v505 = vadd.f32 %v485, %v503
        %v506 = vadd.f32 %v486, %v503
        %v507 = vadd.f32 %v487, %v503
        %v508 = vadd.f32 %v488, %v503
        %v509 = vadd.f32 %v489, %v503
        %v510 = vadd.f32 %v490, %v503
        %v511 = vadd.f32 %v491, %v503
        %v512 = vadd.f32 %v492, %v503
        %v513 = vadd.f32 %v493, %v503
        %v514 = vadd.f32 %v494, %v503
        %v515 = vadd.f32 %v495, %v503
        %v516 = vadd.f32 %v496, %v503
        %v517 = vadd.f32 %v497, %v503
        %v518 = vadd.f32 %v498, %v503
        %v519 = vadd.f32 %v499, %v503
        %v520 = vadd.f32 %v500, %v503
        %v521 = vtanh.pop %v505
        %v522 = vtanh.pop %v506
        %v523 = vtanh.pop %v507
        %v524 = vtanh.pop %v508
        %v525 = vtanh.pop %v509
        %v526 = vtanh.pop %v510
        %v527 = vtanh.pop %v511
        %v528 = vtanh.pop %v512
        %v529 = vtanh.pop %v513
        %v530 = vtanh.pop %v514
        %v531 = vtanh.pop %v515
        %v532 = vtanh.pop %v516
        %v533 = vtanh.pop %v517
        %v534 = vtanh.pop %v518
        %v535 = vtanh.pop %v519
        %v536 = vtanh.pop %v520
        %537 = vst [vmem:[%s242] sm:$0xff] %v521
        %538 = vst [vmem:[%s242 + $0x8] sm:$0xff] %v522
        %539 = vst [vmem:[%s242 + $0x10] sm:$0xff] %v523
        %540 = vst [vmem:[%s242 + $0x18] sm:$0xff] %v524
        %541 = vst [vmem:[%s242 + $0x20] sm:$0xff] %v525
        %542 = vst [vmem:[%s242 + $0x28] sm:$0xff] %v526
        %543 = vst [vmem:[%s242 + $0x30] sm:$0xff] %v527
        %544 = vst [vmem:[%s242 + $0x38] sm:$0xff] %v528
        %545 = vst [vmem:[%s242 + $0x40] sm:$0xff] %v529
        %546 = vst [vmem:[%s242 + $0x48] sm:$0xff] %v530
        %547 = vst [vmem:[%s242 + $0x50] sm:$0xff] %v531
        %548 = vst [vmem:[%s242 + $0x58] sm:$0xff] %v532
        %549 = vst [vmem:[%s242 + $0x60] sm:$0xff] %v533
        %550 = vst [vmem:[%s242 + $0x68] sm:$0xff] %v534
        %551 = vst [vmem:[%s242 + $0x70] sm:$0xff] %v535
        %552 = vst [vmem:[%s242 + $0x78] sm:$0xff] %v536
      $region52: #{linear_block_forward.1} parent=39 // pred_fallthru
        _
      %s553 = smul.u32 %s20, %s21
      %s554 = smul.u32 16, %s553
      %p555 = scmp.lt.s32.totalorder %s554, 31
      %s556 = scalar_select %p555, %s554, 31
      %s557 = smul.addr %s556, 8
      %s558 = scalar_lea.vmem %s5, %s557
      // Predicated region
      $region53: #{linear_block_forward.1} parent=39 // pred_check
        %p559 = pneg %p158
      $region54: #{linear_block_forward.1} parent=39 // pred_check_branch
        %561 = sbr.rel (%p559) target = $region56
      $region55: #{linear_block_forward.1} parent=39 // pred_region
        %s562 = smul.u32 %s20, %s21
        %s563 = smul.u32 16, %s562
      $region56: #{linear_block_forward.1} parent=39 // pred_fallthru
        _
    $region40: #{linear_block_forward.1} parent=5 // pred_fallthru
      _
    %p564 = scmp.le.s32.totalorder 2, %s11
    // Predicated region
    $region57: #{linear_block_forward.1} parent=5 // pred_check
      %p565 = pneg %p564
    $region58: #{linear_block_forward.1} parent=5 // pred_check_branch
      %567 = sbr.rel (%p565) target = $region60
    $region59: #{linear_block_forward.1} parent=5 // pred_region
      %s568 = ssub.s32 %s11, 2
      // Predicated region
      $region61: #{linear_block_forward.1} parent=59 // pred_check
        %p569 = pneg %p164
      $region62: #{linear_block_forward.1} parent=59 // pred_check_branch
        %571 = sbr.rel (%p569) target = $region64
      $region63: #{linear_block_forward.1} parent=59 // pred_region
        %s572 = smul.u32 %s22, %s23
        %s573 = smul.u32 16, %s572
        %p574 = scmp.lt.s32.totalorder %s573, 31
        %s575 = scalar_select %p574, %s573, 31
        %s576 = smul.addr %s575, 8
        %s577 = scalar_lea.vmem %s5, %s576
      $region64: #{linear_block_forward.1} parent=59 // pred_fallthru
        _
    $region60: #{linear_block_forward.1} parent=5 // pred_fallthru
      _
  $region6: #{linear_block_forward.1} parent=0 // loop_footer
    %s15 = sadd.s32 1, %s11
  $region7: #{linear_block_forward.1} parent=0 // loop_footer_branch
    %10 = sbr.rel target = $region3
  $region8: #{linear_block_forward.1} parent=0 // loop_exit
    _

</llo_original>
